<compile_context>
chip_gen: v7x
topology: tpu7x:2x2x1
jax: 0.10.0
libtpu: 0.0.40
codegen_flags: <defaults>
</compile_context>

<pallas_src>
import functools
import math

import numpy as np

import jax
import jax.numpy as jnp
from jax.experimental import pallas as pl
from jax.experimental.pallas import tpu as pltpu

ACT_DTYPE = jnp.bfloat16      # inter-layer activations
MM_DTYPE = jnp.bfloat16       # matmul input dtype (accumulation stays f32)
BN_EPS = 1e-5
VMEM_LIMIT = 32 * 1024 * 1024  # explicit scoped-VMEM limit (safe on v5e/v6e/v7x)


def _round_up(v, m):
    return (v + m - 1) // m * m


# ----------------------------------------------------------------------------
# Pallas kernels
# ----------------------------------------------------------------------------
def _make_matmul_kernel(nk, relu, has_res, emit_stats):
    """Tiled matmul with optional fused (ReLU -> +post-ReLU residual) epilogue.

    grid = (m_tiles, n_tiles, k_tiles); K is innermost ("arbitrary") so the
    f32 accumulator scratch is valid.  If emit_stats, per-(m_tile, n_tile)
    partial sum / sum-of-squares of the raw matmul result are written to a
    small side output (used for BatchNorm batch statistics; the scale/shift
    itself is applied by a separate row-tiled kernel).
    Padded rows/cols of x and w are zero, so padded rows contribute nothing to
    the emitted statistics (the caller divides by the true M).
    """

    def kernel(*refs):
        x_ref, w_ref = refs[0], refs[1]
        pos = 2
        r_ref = None
        if has_res:
            r_ref = refs[pos]
            pos += 1
        y_ref = refs[pos]
        pos += 1
        stats_ref = refs[pos] if emit_stats else None
        acc_ref = refs[-1]

        k = pl.program_id(2)

        @pl.when(k == 0)
        def _init():
            acc_ref[...] = jnp.zeros_like(acc_ref)

        acc_ref[...] += jnp.dot(x_ref[...], w_ref[...],
                                preferred_element_type=jnp.float32)

        @pl.when(k == nk - 1)
        def _finalize():
            acc = acc_ref[...]
            y = acc
            if relu:
                y = jnp.maximum(y, 0.0)
            if has_res:
                # Decoder skip: relu(convT(x)) + skip  (added AFTER the ReLU).
                y = y + r_ref[...].astype(jnp.float32)
            y_ref[...] = y.astype(y_ref.dtype)
            if emit_stats:
                stats_ref[0, 0:1, :] = jnp.sum(acc, axis=0, keepdims=True)
                stats_ref[0, 1:2, :] = jnp.sum(acc * acc, axis=0,
                                               keepdims=True)

    return kernel


def _make_affine_kernel(relu, has_res):
    """Per-channel scale/shift (+ pre-ReLU residual) + ReLU, tiled over rows."""

    def kernel(*refs):
        if has_res:
            y_ref, s_ref, b_ref, r_ref, o_ref = refs
        else:
            y_ref, s_ref, b_ref, o_ref = refs
        y = y_ref[...].astype(jnp.float32) * s_ref[...] + b_ref[...]
        if has_res:
            y = y + r_ref[...].astype(jnp.float32)  # Bottleneck: add BEFORE relu
        if relu:
            y = jnp.maximum(y, 0.0)
        o_ref[...] = y.astype(o_ref.dtype)

    return kernel


def _add_kernel(a_ref, b_ref, o_ref):
    o_ref[...] = (a_ref[...].astype(jnp.float32)
                  + b_ref[...].astype(jnp.float32)).astype(o_ref.dtype)


def _maxpool_kernel(x_ref, o_ref):
    # x_ref: (9, TM, C) -- the 9 taps of the 3x3 window stacked on a leading
    # axis so the (sublane, lane) dims stay (rows, channels).
    r = x_ref[0]
    for t in range(1, 9):
        r = jnp.maximum(r, x_ref[t])
    o_ref[...] = r


# ----------------------------------------------------------------------------
# pallas_call builders (lru_cache -> each unique config compiles exactly once)
# ----------------------------------------------------------------------------
@functools.lru_cache(maxsize=None)
def _matmul_call(Mp, Kp, Np, TM, TK, TN, relu, has_res, emit_stats,
                 out_dtype_name):
    nm, nn, nk = Mp // TM, Np // TN, Kp // TK
    out_dtype = np.dtype(out_dtype_name)
    kernel = _make_matmul_kernel(nk=nk, relu=relu, has_res=has_res,
                                 emit_stats=emit_stats)

    in_specs = [
        pl.BlockSpec((TM, TK), lambda i, j, k: (i, k)),
        pl.BlockSpec((TK, TN), lambda i, j, k: (k, j)),
    ]
    if has_res:
        in_specs.append(pl.BlockSpec((TM, TN), lambda i, j, k: (i, j)))

    y_spec = pl.BlockSpec((TM, TN), lambda i, j, k: (i, j))
    if emit_stats:
        out_shape = (jax.ShapeDtypeStruct((Mp, Np), out_dtype),
                     jax.ShapeDtypeStruct((nm, 2, Np), jnp.float32))
        out_specs = [y_spec,
                     pl.BlockSpec((1, 2, TN), lambda i, j, k: (i, 0, j))]
    else:
        out_shape = jax.ShapeDtypeStruct((Mp, Np), out_dtype)
        out_specs = y_spec

    cost = pl.CostEstimate(
        flops=2 * Mp * Np * Kp,
        transcendentals=0,
        bytes_accessed=(Mp * Kp * 2 * nn + Kp * Np * 2 * nm
                        + Mp * Np * out_dtype.itemsize
                        + (Mp * Np * 2 if has_res else 0)))

    fn = pl.pallas_call(
        kernel,
        out_shape=out_shape,
        grid_spec=pltpu.PrefetchScalarGridSpec(
            num_scalar_prefetch=0,
            grid=(nm, nn, nk),
            in_specs=in_specs,
            out_specs=out_specs,
            scratch_shapes=[pltpu.VMEM((TM, TN), jnp.float32)],
        ),
        compiler_params=pltpu.CompilerParams(
            dimension_semantics=("parallel", "parallel", "arbitrary"),
            vmem_limit_bytes=VMEM_LIMIT),
        cost_estimate=cost,
    )
    return jax.jit(fn)


@functools.lru_cache(maxsize=None)
def _affine_call(Mp, Np, TM, relu, has_res, out_dtype_name):
    nm = Mp // TM
    out_dtype = np.dtype(out_dtype_name)
    kernel = _make_affine_kernel(relu=relu, has_res=has_res)
    in_specs = [
        pl.BlockSpec((TM, Np), lambda i: (i, 0)),
        pl.BlockSpec((1, Np), lambda i: (0, 0)),
        pl.BlockSpec((1, Np), lambda i: (0, 0)),
    ]
    if has_res:
        in_specs.append(pl.BlockSpec((TM, Np), lambda i: (i, 0)))
    cost = pl.CostEstimate(
        flops=4 * Mp * Np,
        transcendentals=0,
        bytes_accessed=Mp * Np * (4 + out_dtype.itemsize
                                  + (2 if has_res else 0)))
    fn = pl.pallas_call(
        kernel,
        out_shape=jax.ShapeDtypeStruct((Mp, Np), out_dtype),
        grid_spec=pltpu.PrefetchScalarGridSpec(
            num_scalar_prefetch=0,
            grid=(nm,),
            in_specs=in_specs,
            out_specs=pl.BlockSpec((TM, Np), lambda i: (i, 0)),
        ),
        compiler_params=pltpu.CompilerParams(
            dimension_semantics=("parallel",),
            vmem_limit_bytes=VMEM_LIMIT),
        cost_estimate=cost,
    )
    return jax.jit(fn)


@functools.lru_cache(maxsize=None)
def _add_call(Mp, C, TM, dtype_name):
    dtype = np.dtype(dtype_name)
    fn = pl.pallas_call(
        _add_kernel,
        out_shape=jax.ShapeDtypeStruct((Mp, C), dtype),
        grid_spec=pltpu.PrefetchScalarGridSpec(
            num_scalar_prefetch=0,
            grid=(Mp // TM,),
            in_specs=[pl.BlockSpec((TM, C), lambda i: (i, 0)),
                      pl.BlockSpec((TM, C), lambda i: (i, 0))],
            out_specs=pl.BlockSpec((TM, C), lambda i: (i, 0)),
        ),
        compiler_params=pltpu.CompilerParams(
            dimension_semantics=("parallel",),
            vmem_limit_bytes=VMEM_LIMIT),
    )
    return jax.jit(fn)


@functools.lru_cache(maxsize=None)
def _maxpool_call(Mp, C, TM, dtype_name):
    dtype = np.dtype(dtype_name)
    fn = pl.pallas_call(
        _maxpool_kernel,
        out_shape=jax.ShapeDtypeStruct((Mp, C), dtype),
        grid_spec=pltpu.PrefetchScalarGridSpec(
            num_scalar_prefetch=0,
            grid=(Mp // TM,),
            in_specs=[pl.BlockSpec((9, TM, C), lambda i: (0, i, 0))],
            out_specs=pl.BlockSpec((TM, C), lambda i: (i, 0)),
        ),
        compiler_params=pltpu.CompilerParams(
            dimension_semantics=("parallel",),
            vmem_limit_bytes=VMEM_LIMIT),
    )
    return jax.jit(fn)


# ----------------------------------------------------------------------------
# Pallas wrappers
# ----------------------------------------------------------------------------
def pallas_matmul(x, w, *, relu=False, residual=None, emit_stats=False,
                  out_dtype=jnp.float32):
    """Padded y = x @ w with optional fused (ReLU -> +residual) epilogue.

    Returns (y_padded, stats_or_None); the caller slices [:M, :N].
    """
    M, K = x.shape
    K2, N = w.shape
    assert K == K2

    TM = min(256, _round_up(M, 8))
    Mp = _round_up(M, TM)
    Kp = _round_up(K, 128)
    TK = 256 if Kp % 256 == 0 else 128   # 256-wide MXU on v6e/v7x, 128 on v5e ok
    Np = _round_up(N, 128)
    TN = 256 if Np % 256 == 0 else 128

    xp = jnp.pad(x, ((0, Mp - M), (0, Kp - K))).astype(MM_DTYPE)
    wp = jnp.pad(w, ((0, Kp - K), (0, Np - N))).astype(MM_DTYPE)
    args = [xp, wp]
    if residual is not None:
        rp = jnp.pad(residual, ((0, Mp - M), (0, Np - N))).astype(MM_DTYPE)
        args.append(rp)

    fn = _matmul_call(Mp, Kp, Np, TM, TK, TN, bool(relu),
                      residual is not None, bool(emit_stats),
                      np.dtype(out_dtype).name)
    res = fn(*args)
    if emit_stats:
        return res[0], res[1]
    return res, None


def pallas_affine(y_pad, scale, shift, *, relu, residual_pad=None,
                  out_dtype=ACT_DTYPE):
    Mp, Np = y_pad.shape
    TM = min(256, Mp)   # Mp is either < 256 (full) or a multiple of 256
    args = [y_pad,
            scale.reshape(1, Np).astype(jnp.float32),
            shift.reshape(1, Np).astype(jnp.float32)]
    if residual_pad is not None:
        args.append(residual_pad)
    fn = _affine_call(Mp, Np, TM, bool(relu), residual_pad is not None,
                      np.dtype(out_dtype).name)
    return fn(*args)


def add_nhwc(a, b):
    n, h, w, c = a.shape
    M = n * h * w
    TM = min(512, _round_up(M, 8))
    Mp = _round_up(M, TM)
    a2 = jnp.pad(a.reshape(M, c), ((0, Mp - M), (0, 0)))
    b2 = jnp.pad(b.reshape(M, c), ((0, Mp - M), (0, 0)))
    out = _add_call(Mp, c, TM, np.dtype(a.dtype).name)(a2, b2)
    return out[:M].reshape(n, h, w, c)


def maxpool_3x3_s2_p1(x):
    n, h, w, c = x.shape
    ho = (h + 2 - 3) // 2 + 1
    wo = (w + 2 - 3) // 2 + 1
    xp = jnp.pad(x, ((0, 0), (1, 1), (1, 1), (0, 0)),
                 constant_values=-jnp.inf)
    taps = [xp[:, di:di + 2 * ho:2, dj:dj + 2 * wo:2, :]
            for di in range(3) for dj in range(3)]
    M = n * ho * wo
    stacked = jnp.stack(taps, axis=0).reshape(9, M, c)
    TM = min(512, _round_up(M, 8))
    Mp = _round_up(M, TM)
    stacked = jnp.pad(stacked, ((0, 0), (0, Mp - M), (0, 0)))
    out = _maxpool_call(Mp, c, TM, np.dtype(x.dtype).name)(stacked)
    return out[:M].reshape(n, ho, wo, c)


# ----------------------------------------------------------------------------
# Convolution glue (im2col) — the matmul itself runs inside the Pallas kernel.
# ----------------------------------------------------------------------------
def _im2col(x, kh, kw, stride, pad):
    # NHWC input -> (N*Ho*Wo, kh*kw*C) patches, tap order (di, dj, c).
    # TODO(synk): the kh*kw tap replication for 3x3/7x7 convs is still
    # materialized in HBM (in bf16); a direct-conv kernel with a tap axis in
    # the grid / manual DMA would remove this remaining im2col overhead.
    n, h, w, c = x.shape
    if pad:
        x = jnp.pad(x, ((0, 0), (pad, pad), (pad, pad), (0, 0)))
    ho = (h + 2 * pad - kh) // stride + 1
    wo = (w + 2 * pad - kw) // stride + 1
    taps = [x[:, di:di + stride * ho:stride, dj:dj + stride * wo:stride, :]
            for di in range(kh) for dj in range(kw)]
    patches = jnp.concatenate(taps, axis=-1)
    return patches.reshape(n * ho * wo, kh * kw * c), (n, ho, wo)


def conv_bn(x, w_mat, kh, kw, stride, pad, *, bn=None, relu=False,
            residual=None, out_dtype=ACT_DTYPE):
    """Conv (no bias) [+ BatchNorm(batch stats) + pre-ReLU residual + ReLU]."""
    patches, (n, ho, wo) = _im2col(x, kh, kw, stride, pad)
    M = n * ho * wo
    cout = w_mat.shape[1]

    if bn is None:
        y_pad, _ = pallas_matmul(patches, w_mat, relu=relu, emit_stats=False,
                                 out_dtype=out_dtype)
        return y_pad[:M, :cout].reshape(n, ho, wo, cout)

    # Raw conv (f32) + per-tile partial stats emitted by the matmul kernel.
    y_pad, stats = pallas_matmul(patches, w_mat, emit_stats=True,
                                 out_dtype=jnp.float32)
    Mp, Np = y_pad.shape
    gamma, beta = bn
    gamma_p = jnp.pad(gamma.astype(jnp.float32), (0, Np - cout),
                      constant_values=1.0)
    beta_p = jnp.pad(beta.astype(jnp.float32), (0, Np - cout))
    ssum = jnp.sum(stats[:, 0, :], axis=0)
    ssq = jnp.sum(stats[:, 1, :], axis=0)
    mean = ssum / M
    var = jnp.maximum(ssq / M - mean * mean, 0.0)   # clamp: cancellation guard
    scale = gamma_p * jax.lax.rsqrt(var + BN_EPS)
    shift = beta_p - mean * scale

    res_pad = None
    if residual is not None:
        res2 = residual.reshape(M, cout)
        res_pad = jnp.pad(res2, ((0, Mp - M), (0, Np - cout))).astype(ACT_DTYPE)

    out_pad = pallas_affine(y_pad, scale, shift, relu=relu,
                            residual_pad=res_pad, out_dtype=out_dtype)
    return out_pad[:M, :cout].reshape(n, ho, wo, cout)


def conv_transpose_4x4_s2_p1(x, w_mat, *, relu, skip=None,
                             out_dtype=ACT_DTYPE):
    """ConvTranspose2d(k=4, s=2, p=1, bias=False) [+ ReLU [+ post-ReLU skip]].

    Decomposed into 4 output-parity phases, each a 2x2 conv on the un-dilated
    input, so no MXU work is spent on the structural zeros of the dilated
    formulation.  Equivalent to the "dilate by 2, pad 2, 4x4 conv" lowering
    with the weight stored in (di, dj, cin, cout) tap order.
    # TODO(synk): loading a real PyTorch checkpoint would additionally require
    # the spatial kernel flip / (cin, cout) transpose of ConvTranspose2d
    # weights; weights here are synthetic.
    """
    n, h, w, cin = x.shape
    cout = w_mat.shape[1]
    w4 = w_mat.reshape(4, 4, cin, cout)
    M = n * h * w

    phase_outs = []
    for ph in range(2):
        for pw in range(2):
            xp = jnp.pad(x, ((0, 0), (1 - ph, ph), (1 - pw, pw), (0, 0)))
            taps = [xp[:, ti:ti + h, tj:tj + w, :]
                    for ti in range(2) for tj in range(2)]
            patches = jnp.concatenate(taps, axis=-1).reshape(M, 4 * cin)
            w_phase = w4[ph::2, pw::2].reshape(4 * cin, cout)
            res = None
            if skip is not None:
                res = skip[:, ph::2, pw::2, :].reshape(M, cout)
            y_pad, _ = pallas_matmul(patches, w_phase, relu=relu,
                                     residual=res, emit_stats=False,
                                     out_dtype=out_dtype)
            phase_outs.append(y_pad[:M, :cout])

    y = jnp.stack(phase_outs, axis=1).reshape(n, h, w, 2, 2, cout)
    y = jnp.transpose(y, (0, 1, 3, 2, 4, 5)).reshape(n, 2 * h, 2 * w, cout)
    return y


# ----------------------------------------------------------------------------
# Parameter initialization (deterministic, synthetic — no checkpoint load)
# ----------------------------------------------------------------------------
class KeyGen:
    def __init__(self, seed):
        self._key = jax.random.PRNGKey(seed)
        self._i = 0

    def __call__(self):
        self._i += 1
        return jax.random.fold_in(self._key, self._i)


def conv_w_init(key, cin, cout, kh, kw):
    # Stored directly in im2col layout (kh*kw*cin, cout): PyTorch's
    # (cout, cin, kh, kw) weight via permute(2, 3, 1, 0).reshape.
    fan_in = cin * kh * kw
    return (jax.random.normal(key, (kh * kw * cin, cout), jnp.float32)
            / math.sqrt(fan_in))


def bn_init(c):
    return (jnp.ones((c,), jnp.float32), jnp.zeros((c,), jnp.float32))


def bottleneck_init(kg, inp, places, downsample=False, expansion=4):
    p = {
        'w1': conv_w_init(kg(), inp, places, 1, 1), 'bn1': bn_init(places),
        'w2': conv_w_init(kg(), places, places, 3, 3), 'bn2': bn_init(places),
        'w3': conv_w_init(kg(), places, places * expansion, 1, 1),
        'bn3': bn_init(places * expansion),
    }
    if downsample:
        p['wd'] = conv_w_init(kg(), inp, places * expansion, 1, 1)
        p['bnd'] = bn_init(places * expansion)
    return p


def resnet_layer_init(kg, inplanes, planes, blocks):
    layer = [bottleneck_init(kg, inplanes, planes, downsample=True)]
    for _ in range(blocks - 1):
        layer.append(bottleneck_init(kg, planes * 4, planes, downsample=False))
    return layer


def init_generator_params(seed=42):
    kg = KeyGen(seed)
    p = {}
    p['conv1_w'] = conv_w_init(kg(), 3, 64, 7, 7)
    p['bn1'] = bn_init(64)
    p['layer1'] = resnet_layer_init(kg, 64, 64, 3)
    p['layer2'] = resnet_layer_init(kg, 256, 128, 4)
    p['layer3'] = resnet_layer_init(kg, 512, 256, 6)
    p['layer4'] = resnet_layer_init(kg, 1024, 512, 3)   # stride forced to 1

    p['deconv1'] = [bottleneck_init(kg, 2048, 512, False),
                    bottleneck_init(kg, 2048, 256, True)]
    p['deconv2'] = [bottleneck_init(kg, 1024, 256, False),
                    bottleneck_init(kg, 1024, 128, True)]
    p['deconv3'] = [bottleneck_init(kg, 512, 128, False),
                    bottleneck_init(kg, 512, 64, True)]
    p['deconv4'] = [bottleneck_init(kg, 256, 64, False),
                    bottleneck_init(kg, 256, 32, True)]

    # up1 (1024->1024) exists in __init__ but is never used in forward; skipped.
    p['up2'] = conv_w_init(kg(), 512, 512, 4, 4)
    p['up3'] = conv_w_init(kg(), 256, 256, 4, 4)
    p['up4'] = conv_w_init(kg(), 128, 64, 4, 4)
    p['deconv5'] = conv_w_init(kg(), 64, 3, 4, 4)
    return p


# ----------------------------------------------------------------------------
# Forward pass
# ----------------------------------------------------------------------------
def bottleneck_forward(x, p, stride):
    out = conv_bn(x, p['w1'], 1, 1, 1, 0, bn=p['bn1'], relu=True)
    out = conv_bn(out, p['w2'], 3, 3, stride, 1, bn=p['bn2'], relu=True)
    if 'wd' in p:
        residual = conv_bn(x, p['wd'], 1, 1, stride, 0, bn=p['bnd'], relu=False)
    else:
        residual = x
    # final 1x1 conv + BN, with the pre-ReLU residual add + ReLU fused into
    # the BN-apply kernel
    out = conv_bn(out, p['w3'], 1, 1, 1, 0, bn=p['bn3'], relu=True,
                  residual=residual)
    return out


def run_blocks(x, blocks, stride=1):
    for bi, b in enumerate(blocks):
        x = bottleneck_forward(x, b, stride if bi == 0 else 1)
    return x


def generator_forward(params, x_nchw):
    # PyTorch NCHW input -> NHWC (bf16) for the TPU kernels.
    x = jnp.transpose(x_nchw, (0, 2, 3, 1)).astype(ACT_DTYPE)

    x1 = conv_bn(x, params['conv1_w'], 7, 7, 2, 3, bn=params['bn1'], relu=True)
    x2 = maxpool_3x3_s2_p1(x1)
    x2 = run_blocks(x2, params['layer1'], stride=1)
    x3 = run_blocks(x2, params['layer2'], stride=2)
    x4 = run_blocks(x3, params['layer3'], stride=2)
    x5 = run_blocks(x4, params['layer4'], stride=1)  # layer4[0] forced stride 1

    dx1 = run_blocks(x5, params['deconv1'])
    dx2 = add_nhwc(dx1, x4)
    dx2 = run_blocks(dx2, params['deconv2'])
    # up-convs: relu(convT(.)) + skip, with the skip add fused in the epilogue
    dx3 = conv_transpose_4x4_s2_p1(dx2, params['up2'], relu=True, skip=x3)
    dx3 = run_blocks(dx3, params['deconv3'])
    dx4 = conv_transpose_4x4_s2_p1(dx3, params['up3'], relu=True, skip=x2)
    dx4 = run_blocks(dx4, params['deconv4'])
    dx5 = conv_transpose_4x4_s2_p1(dx4, params['up4'], relu=True, skip=x1)
    dx5 = conv_transpose_4x4_s2_p1(dx5, params['deconv5'], relu=False,
                                   out_dtype=jnp.float32)

    return jnp.transpose(dx5, (0, 3, 1, 2)).astype(jnp.float32)  # back to NCHW


# ----------------------------------------------------------------------------
if __name__ == "__main__":
    params = init_generator_params(seed=42)
    key = jax.random.PRNGKey(0)
    x = jax.random.normal(key, (2, 3, 32, 32), jnp.float32)  # NCHW like PyTorch

    out = generator_forward(params, x)
    out = jax.block_until_ready(out)

    assert out.shape == (2, 3, 32, 32), out.shape
    assert jnp.isfinite(out).all()
    print("KERNEL_OK")
</pallas_src>

<mosaic_0001>
module attributes {stable_mosaic.version = 11 : i64} {
  func.func @kernel(%arg0: i32, %arg1: i32, %arg2: i32, %arg3: memref<256x256xbf16, #tpu.memory_space<vmem>>, %arg4: memref<256x128xbf16, #tpu.memory_space<vmem>>, %arg5: memref<256x128xf32, #tpu.memory_space<vmem>>, %arg6: memref<1x2x128xf32, #tpu.memory_space<vmem>>, %arg7: memref<256x128xf32, #tpu.memory_space<vmem>>) attributes {dimension_semantics = [#tpu.dimension_semantics<parallel>, #tpu.dimension_semantics<parallel>, #tpu.dimension_semantics<arbitrary>], iteration_bounds = array<i64: 2, 1, 1>, scalar_prefetch = 0 : i64, scratch_operands = 1 : i64, tpu.core_type = #tpu.core_type<tc>, window_params = [{transform_indices = @transform_0, window_bounds = array<i64: 256, 256>}, {transform_indices = @transform_1, window_bounds = array<i64: 256, 128>}, {transform_indices = @transform_2, window_bounds = array<i64: 256, 128>}, {transform_indices = @transform_3, window_bounds = array<i64: 1, 2, 128>}]} {
    %c0_i32 = arith.constant 0 : i32
    %0 = arith.cmpi eq, %arg2, %c0_i32 : i32
    %1 = arith.extui %0 : i1 to i32
    %c0_i32_0 = arith.constant 0 : i32
    %2 = arith.cmpi ne, %1, %c0_i32_0 : i32
    scf.if %2 {
      %cst_10 = arith.constant 0.000000e+00 : f32
      %12 = vector.broadcast %cst_10 : f32 to vector<256x128xf32>
      %c0_11 = arith.constant 0 : index
      %c0_12 = arith.constant 0 : index
      %13 = vector.load %arg7[%c0_11, %c0_12] : memref<256x128xf32, #tpu.memory_space<vmem>>, vector<256x128xf32>
      tpu.vector_store %arg7[%c0_11, %c0_12], %12 {strides = array<i32>} : memref<256x128xf32, #tpu.memory_space<vmem>>, vector<256x128xf32>,
    } else {
    }
    %c0 = arith.constant 0 : index
    %c0_1 = arith.constant 0 : index
    %3 = vector.load %arg7[%c0, %c0_1] : memref<256x128xf32, #tpu.memory_space<vmem>>, vector<256x128xf32>
    %c0_2 = arith.constant 0 : index
    %c0_3 = arith.constant 0 : index
    %4 = vector.load %arg3[%c0_2, %c0_3] : memref<256x256xbf16, #tpu.memory_space<vmem>>, vector<256x256xbf16>
    %c0_4 = arith.constant 0 : index
    %c0_5 = arith.constant 0 : index
    %5 = vector.load %arg4[%c0_4, %c0_5] : memref<256x128xbf16, #tpu.memory_space<vmem>>, vector<256x128xbf16>
    %cst = arith.constant dense<0.000000e+00> : vector<256x128xf32>
    %6 = tpu.matmul %4, %5, %cst {dimension_numbers = #tpu.dot_dimension_numbers<[1], [0], [0], [1], [0, 0, 1, 1], [], []>} : vector<256x256xbf16>, vector<256x128xbf16>, vector<256x128xf32> -> vector<256x128xf32>
    %7 = arith.addf %3, %6 : vector<256x128xf32>
    %c0_6 = arith.constant 0 : index
    %c0_7 = arith.constant 0 : index
    %8 = vector.load %arg7[%c0_6, %c0_7] : memref<256x128xf32, #tpu.memory_space<vmem>>, vector<256x128xf32>
    tpu.vector_store %arg7[%c0_6, %c0_7], %7 {strides = array<i32>} : memref<256x128xf32, #tpu.memory_space<vmem>>, vector<256x128xf32>,
    %c0_i32_8 = arith.constant 0 : i32
    %9 = arith.cmpi eq, %arg2, %c0_i32_8 : i32
    %10 = arith.extui %9 : i1 to i32
    %c0_i32_9 = arith.constant 0 : i32
    %11 = arith.cmpi ne, %10, %c0_i32_9 : i32
    scf.if %11 {
      %c0_10 = arith.constant 0 : index
      %c0_11 = arith.constant 0 : index
      %12 = vector.load %arg7[%c0_10, %c0_11] : memref<256x128xf32, #tpu.memory_space<vmem>>, vector<256x128xf32>
      %c0_12 = arith.constant 0 : index
      %c0_13 = arith.constant 0 : index
      %13 = vector.load %arg5[%c0_12, %c0_13] : memref<256x128xf32, #tpu.memory_space<vmem>>, vector<256x128xf32>
      tpu.vector_store %arg5[%c0_12, %c0_13], %12 {strides = array<i32>} : memref<256x128xf32, #tpu.memory_space<vmem>>, vector<256x128xf32>,
      %cst_14 = arith.constant dense<0.000000e+00> : vector<128xf32>
      %14 = vector.multi_reduction <add>, %12, %cst_14 [0] : vector<256x128xf32> to vector<128xf32>
      %15 = vector.shape_cast %14 : vector<128xf32> to vector<1x128xf32>
      %c0_15 = arith.constant 0 : index
      %c0_16 = arith.constant 0 : index
      %c0_17 = arith.constant 0 : index
      %16 = vector.load %arg6[%c0_15, %c0_16, %c0_17] : memref<1x2x128xf32, #tpu.memory_space<vmem>>, vector<1x1x128xf32>
      %17 = vector.shape_cast %16 : vector<1x1x128xf32> to vector<1x128xf32>
      %18 = vector.shape_cast %15 : vector<1x128xf32> to vector<1x1x128xf32>
      tpu.vector_store %arg6[%c0_15, %c0_16, %c0_17], %18 {strides = array<i32>} : memref<1x2x128xf32, #tpu.memory_space<vmem>>, vector<1x1x128xf32>,
      %19 = arith.mulf %12, %12 : vector<256x128xf32>
      %cst_18 = arith.constant dense<0.000000e+00> : vector<128xf32>
      %20 = vector.multi_reduction <add>, %19, %cst_18 [0] : vector<256x128xf32> to vector<128xf32>
      %21 = vector.shape_cast %20 : vector<128xf32> to vector<1x128xf32>
      %c0_19 = arith.constant 0 : index
      %c1 = arith.constant 1 : index
      %c0_20 = arith.constant 0 : index
      %22 = vector.load %arg6[%c0_19, %c1, %c0_20] : memref<1x2x128xf32, #tpu.memory_space<vmem>>, vector<1x1x128xf32>
      %23 = vector.shape_cast %22 : vector<1x1x128xf32> to vector<1x128xf32>
      %24 = vector.shape_cast %21 : vector<1x128xf32> to vector<1x1x128xf32>
      tpu.vector_store %arg6[%c0_19, %c1, %c0_20], %24 {strides = array<i32>} : memref<1x2x128xf32, #tpu.memory_space<vmem>>, vector<1x1x128xf32>,
    } else {
    }
    return
  }
  func.func @transform_0(%arg0: i32, %arg1: i32, %arg2: i32) -> (i32, i32) {
    %c0_i32 = arith.constant 0 : i32
    return %arg0, %arg2 : i32, i32
  }
  func.func @transform_1(%arg0: i32, %arg1: i32, %arg2: i32) -> (i32, i32) {
    %c0_i32 = arith.constant 0 : i32
    return %arg2, %arg1 : i32, i32
  }
  func.func @transform_2(%arg0: i32, %arg1: i32, %arg2: i32) -> (i32, i32) {
    %c0_i32 = arith.constant 0 : i32
    return %arg0, %arg1 : i32, i32
  }
  func.func @transform_3(%arg0: i32, %arg1: i32, %arg2: i32) -> (i32, i32, i32) {
    %c0_i32 = arith.constant 0 : i32
    %c0_i32_0 = arith.constant 0 : i32
    return %arg0, %c0_i32, %arg1 : i32, i32, i32
  }
}

</mosaic_0001>

<llo_original>
// kernel: tpu_custom_call.1
$region0: #{tpu_custom_call.1}
  #allocation0 [shape = 'u32[]', space=smem, size = 0x4, offset = 0x4, fixed_abs, tag = 'smem constant byte address 0x4 - core index']
  #allocation1 [shape = 'u32[144,128]{1,0:T(1,128)}', space=vmem, size = 0x12000, scoped, tag = 'internal scratch']
  #allocation2 [shape = 'f32[256,128]{1,0:T(8,128)}', space=vmem, size = 0x20000, scoped, tag = 'scratch operand']
  %s0 = inlined_call_operand.hbm [shape: bf16[512,256], index: 0, kind: input, shape index: {}]
  %s1 = inlined_call_operand.hbm [shape: bf16[256,128], index: 1, kind: input, shape index: {}]
  %s2 = inlined_call_operand.hbm [shape: f32[512,128], index: 2, kind: output, shape index: {0}]
  %s3 = inlined_call_operand.hbm [shape: f32[2,2,128], index: 3, kind: output, shape index: {1}]
  %4 = xla_tuple %s2, %s3
  %s5 = sld [smem:[#allocation0]]
  $region65: #{tpu_custom_call.1} parent=0
    _
  %s7 = ssub.s32 1, %s5
  %s8 = scalar_select 0, %s7, %s5
  $region1: #{tpu_custom_call.1} parent=0
    #allocation3 [shape = 'u8[262144]{0}', space=vmem, size = 0x40000, scoped, tag = 'input window, operand 0']
    #allocation4 [shape = 's32[2]{0}', space=sflag, size = 0x8, scoped, tag = 'scoped memory for tpu_custom_call.1']
    #allocation5 [shape = 's32[2]{0}', space=sflag, size = 0x8, scoped, tag = 'scoped memory for tpu_custom_call.1']
    #allocation6 [shape = 'u8[65536]{0}', space=vmem, size = 0x10000, scoped, tag = 'input window, operand 1, single buffered']
    #allocation7 [shape = 's32[1]{0}', space=sflag, size = 0x4, scoped, tag = 'scoped memory for tpu_custom_call.1']
    #allocation8 [shape = 'u8[262144]{0}', space=vmem, size = 0x40000, scoped, tag = 'output window, operand 0']
    #allocation9 [shape = 'u8[2048]{0}', space=vmem, size = 0x800, scoped, tag = 'output window, operand 1']
    #allocation10 [shape = 's32[2]{0}', space=sflag, size = 0x8, scoped, tag = 'scoped memory for tpu_custom_call.1']
    %9 = vsyncpa [#allocation4], 0
    %s10 = scalar_lea.sflag [#allocation4], 1
    %11 = vsyncpa %s10, 0
    %12 = vsyncpa [#allocation7], 0
    %13 = vsyncpa [#allocation5], 0
    %s14 = scalar_lea.sflag [#allocation5], 1
    %15 = vsyncpa %s14, 0
    %16 = vsyncpa [#allocation10], 0
    %s17 = scalar_lea.sflag [#allocation10], 1
    %18 = vsyncpa %s17, 0
    loop: start=0, step=1, limit=4
    $region2: #{tpu_custom_call.1} parent=1 // loop_pre_header
      _
    $region3: #{tpu_custom_call.1} parent=1 // loop_header
      %s20 = sphi 0, %s24
      %p21 = scmp.ge.s32.totalorder %s20, 4
      %s27 = sphi 0, %s46
      %s28 = sphi 0, %s42
      %s29 = sphi 0, %s38
      %s30 = sphi 0, %s27
      %s31 = sphi 0, %s28
      %s32 = sphi 0, %s29
      %s33 = sphi 0, %s30
      %s34 = sphi 0, %s31
      %s35 = sphi 0, %s32
      %s51 = sphi 0, %s53
      %s54 = sphi 0, %s51
      %s55 = sphi 0, %s54
      %s71 = sphi 0, %s55
      %s79 = sphi 0, %s81
      %s82 = sphi 0, %s79
      %s83 = sphi 0, %s82
      %s99 = sphi 0, %s83
      %s107 = sphi 0, %s109
      %s110 = sphi 0, %s107
      %s111 = sphi 0, %s110
      %s127 = sphi 0, %s111
      %s135 = sphi 0, %s137
      %s138 = sphi 0, %s135
      %s139 = sphi 0, %s138
      %s155 = sphi 0, %s139
    $region4: #{tpu_custom_call.1} parent=1 // loop_header_branch
      %23 = sbr.rel (%p21) target = $region8
    $region5: #{tpu_custom_call.1} parent=1 // loop_body
      %s25 = ssub.s32 %s20, 1
      %s26 = ssub.s32 %s20, 2
      %s36 = sadd.s32 1, %s29
      %p37 = scmp.ge.s32.totalorder %s36, 1
      %s38 = scalar_select %p37, 0, %s36
      %s39 = sadd.s32 1, %s28
      %s40 = scalar_select %p37, %s39, %s28
      %p41 = scmp.ge.s32.totalorder %s40, 1
      %s42 = scalar_select %p41, 0, %s40
      %s43 = sadd.s32 1, %s27
      %s44 = scalar_select %p41, %s43, %s27
      %p45 = scmp.ge.s32.totalorder %s44, 2
      %s46 = scalar_select %p45, 0, %s44
      %s47 = ssub.s32 %s27, %s46
      %s48 = ssub.s32 %s29, %s38
      %s49 = sor.u32 %s47, %s48
      %p50 = scmp.eq.s32.totalorder %s49, 0
      %s52 = sadd.s32 %s51, 1
      %s53 = scalar_select %p50, %s51, %s52
      %p56 = pneg %p50
      %p57 = scmp.eq.s32.totalorder %s20, 1
      %p58 = por %p56, %p57
      %p59 = scmp.ne.s32.totalorder %s51, %s54
      %p60 = scmp.eq.s32.totalorder %s20, 0
      %p61 = por %p59, %p60
      %p62 = scmp.ne.s32.totalorder %s51, %s54
      %p63 = scmp.eq.s32.totalorder %s25, 1
      %p64 = por %p62, %p63
      %p65 = scmp.ne.s32.totalorder %s54, %s55
      %p66 = scmp.eq.s32.totalorder %s25, 0
      %p67 = por %p65, %p66
      %p68 = scmp.ne.s32.totalorder %s54, %s55
      %p69 = scmp.eq.s32.totalorder %s26, 1
      %p70 = por %p68, %p69
      %p72 = scmp.ne.s32.totalorder %s55, %s71
      %p73 = scmp.eq.s32.totalorder %s26, 0
      %p74 = por %p72, %p73
      %s75 = ssub.s32 %s29, %s38
      %s76 = ssub.s32 %s28, %s42
      %s77 = sor.u32 %s75, %s76
      %p78 = scmp.eq.s32.totalorder %s77, 0
      %s80 = sadd.s32 %s79, 1
      %s81 = scalar_select %p78, %s79, %s80
      %p84 = pneg %p78
      %p85 = scmp.eq.s32.totalorder %s20, 1
      %p86 = por %p84, %p85
      %p87 = scmp.ne.s32.totalorder %s79, %s82
      %p88 = scmp.eq.s32.totalorder %s20, 0
      %p89 = por %p87, %p88
      %p90 = scmp.ne.s32.totalorder %s79, %s82
      %p91 = scmp.eq.s32.totalorder %s25, 1
      %p92 = por %p90, %p91
      %p93 = scmp.ne.s32.totalorder %s82, %s83
      %p94 = scmp.eq.s32.totalorder %s25, 0
      %p95 = por %p93, %p94
      %p96 = scmp.ne.s32.totalorder %s82, %s83
      %p97 = scmp.eq.s32.totalorder %s26, 1
      %p98 = por %p96, %p97
      %p100 = scmp.ne.s32.totalorder %s83, %s99
      %p101 = scmp.eq.s32.totalorder %s26, 0
      %p102 = por %p100, %p101
      %s103 = ssub.s32 %s27, %s46
      %s104 = ssub.s32 %s28, %s42
      %s105 = sor.u32 %s103, %s104
      %p106 = scmp.eq.s32.totalorder %s105, 0
      %s108 = sadd.s32 %s107, 1
      %s109 = scalar_select %p106, %s107, %s108
      %p112 = pneg %p106
      %p113 = scmp.eq.s32.totalorder %s20, 1
      %p114 = por %p112, %p113
      %p115 = scmp.ne.s32.totalorder %s107, %s110
      %p116 = scmp.eq.s32.totalorder %s20, 0
      %p117 = por %p115, %p116
      %p118 = scmp.ne.s32.totalorder %s107, %s110
      %p119 = scmp.eq.s32.totalorder %s25, 1
      %p120 = por %p118, %p119
      %p121 = scmp.ne.s32.totalorder %s110, %s111
      %p122 = scmp.eq.s32.totalorder %s25, 0
      %p123 = por %p121, %p122
      %p124 = scmp.ne.s32.totalorder %s110, %s111
      %p125 = scmp.eq.s32.totalorder %s26, 1
      %p126 = por %p124, %p125
      %p128 = scmp.ne.s32.totalorder %s111, %s127
      %p129 = scmp.eq.s32.totalorder %s26, 0
      %p130 = por %p128, %p129
      %s131 = ssub.s32 %s27, %s46
      %s132 = ssub.s32 %s28, %s42
      %s133 = sor.u32 %s131, %s132
      %p134 = scmp.eq.s32.totalorder %s133, 0
      %s136 = sadd.s32 %s135, 1
      %s137 = scalar_select %p134, %s135, %s136
      %p140 = pneg %p134
      %p141 = scmp.eq.s32.totalorder %s20, 1
      %p142 = por %p140, %p141
      %p143 = scmp.ne.s32.totalorder %s135, %s138
      %p144 = scmp.eq.s32.totalorder %s20, 0
      %p145 = por %p143, %p144
      %p146 = scmp.ne.s32.totalorder %s135, %s138
      %p147 = scmp.eq.s32.totalorder %s25, 1
      %p148 = por %p146, %p147
      %p149 = scmp.ne.s32.totalorder %s138, %s139
      %p150 = scmp.eq.s32.totalorder %s25, 0
      %p151 = por %p149, %p150
      %p152 = scmp.ne.s32.totalorder %s138, %s139
      %p153 = scmp.eq.s32.totalorder %s26, 1
      %p154 = por %p152, %p153
      %p156 = scmp.ne.s32.totalorder %s139, %s155
      %p157 = scmp.eq.s32.totalorder %s26, 0
      %p158 = por %p156, %p157
      %p159 = scmp.le.s32.totalorder 1, %s20
      %p160 = scmp.lt.s32.totalorder %s20, 3
      %p161 = pnand %p159, %p160
      %p162 = pneg %p161
      // Predicated region
      $region9: #{tpu_custom_call.1} parent=5 // pred_check
        _
      $region10: #{tpu_custom_call.1} parent=5 // pred_check_branch
        %164 = sbr.rel (%p161) target = $region12
      $region11: #{tpu_custom_call.1} parent=5 // pred_region
        %s165 = ssub.s32 %s20, 1
        // Predicated region
        $region13: #{tpu_custom_call.1} parent=11 // pred_check
          %p166 = pneg %p95
        $region14: #{tpu_custom_call.1} parent=11 // pred_check_branch
          %168 = sbr.rel (%p166) target = $region16
        $region15: #{tpu_custom_call.1} parent=11 // pred_region
          %s169 = smul.u32 32, %s32
          %s171 = ssub.s32 2048, 2048
          %172 = vsyncadd [#allocation7], %s171
          %s173 = sadd.s32 %s31, %s169
          %s174 = smul.addr %s173, 64
          %s175 = scalar_lea.hbm %s1, %s174
          %s176 = sshll.u32 [#allocation6], 4
          %s177 = int_to_ptr.vmem [resolvable:$true] %s176
          %182 = dma.hbm_to_vmem [thread:$0]  %s175, 2048, %s177, [#allocation7], 64, 64, 4
        $region16: #{tpu_custom_call.1} parent=11 // pred_fallthru
          _
      $region12: #{tpu_custom_call.1} parent=5 // pred_fallthru
        _
      %p183 = scmp.lt.s32.totalorder %s20, 2
      // Predicated region
      $region17: #{tpu_custom_call.1} parent=5 // pred_check
        %p184 = pneg %p183
      $region18: #{tpu_custom_call.1} parent=5 // pred_check_branch
        %186 = sbr.rel (%p184) target = $region20
      $region19: #{tpu_custom_call.1} parent=5 // pred_region
        // Predicated region
        $region21: #{tpu_custom_call.1} parent=19 // pred_check
          %p187 = pneg %p61
        $region22: #{tpu_custom_call.1} parent=19 // pred_check_branch
          %189 = sbr.rel (%p187) target = $region24
        $region23: #{tpu_custom_call.1} parent=19 // pred_region
          %s190 = sand.u32 %s51, 1
          %s191 = scalar_lea.sflag [#allocation4], %s190
          %s192 = sand.u32 %s51, 1
          %s193 = smul.addr %s192, 256
          %s194 = scalar_lea.vmem [#allocation3], %s193
          %s195 = smul.u32 32, %s27
          %s196 = smul.u32 2, %s29
          %s198 = ssub.s32 4096, 4096
          %199 = vsyncadd %s191, %s198
          %s200 = smul.addr %s195, 2
          %s201 = sadd.s32 %s196, %s200
          %s202 = smul.addr %s201, 64
          %s203 = scalar_lea.hbm %s0, %s202
          %s204 = sshll.u32 %s194, 4
          %s205 = int_to_ptr.vmem [resolvable:$true] %s204
          %210 = dma.hbm_to_vmem [thread:$0]  %s203, 4096, %s205, %s191, 128, 128, 8
        $region24: #{tpu_custom_call.1} parent=19 // pred_fallthru
          _
      $region20: #{tpu_custom_call.1} parent=5 // pred_fallthru
        _
      %p211 = scmp.le.s32.totalorder 1, %s20
      %p212 = scmp.lt.s32.totalorder %s20, 3
      %p213 = pnand %p211, %p212
      %p214 = pneg %p213
      // Predicated region
      $region25: #{tpu_custom_call.1} parent=5 // pred_check
        _
      $region26: #{tpu_custom_call.1} parent=5 // pred_check_branch
        %216 = sbr.rel (%p213) target = $region28
      $region27: #{tpu_custom_call.1} parent=5 // pred_region
        %s217 = ssub.s32 %s20, 1
        %s218 = sand.u32 %s54, 1
        %s219 = scalar_lea.sflag [#allocation4], %s218
        %s220 = sand.u32 %s54, 1
        %s221 = smul.addr %s220, 256
        %s222 = scalar_lea.vmem [#allocation3], %s221
        // Predicated region
        $region29: #{tpu_custom_call.1} parent=27 // pred_check
          %p223 = pneg %p67
        $region30: #{tpu_custom_call.1} parent=27 // pred_check_branch
          %225 = sbr.rel (%p223) target = $region32
        $region31: #{tpu_custom_call.1} parent=27 // pred_region
          %226 = dma.done %s219, 4096
        $region32: #{tpu_custom_call.1} parent=27 // pred_fallthru
          _
        // Predicated region
        $region33: #{tpu_custom_call.1} parent=27 // pred_check
          %p227 = pneg %p95
        $region34: #{tpu_custom_call.1} parent=27 // pred_check_branch
          %229 = sbr.rel (%p227) target = $region36
        $region35: #{tpu_custom_call.1} parent=27 // pred_region
          %230 = dma.done [#allocation7], 2048
        $region36: #{tpu_custom_call.1} parent=27 // pred_fallthru
          _
        %s231 = sand.u32 %s54, 1
        %s232 = scalar_lea.sflag [#allocation4], %s231
        %s233 = sand.u32 %s54, 1
        %s234 = smul.addr %s233, 256
        %s235 = scalar_lea.vmem [#allocation3], %s234
        %p236 = pneg %p67
        %p237 = pneg %p64
        %p238 = pneg %p95
        %p239 = pneg %p92
        %p240 = pneg %p123
        %p241 = pneg %p120
        %s242 = sand.u32 %s110, 1
        %s243 = scalar_lea.sflag [#allocation5], %s242
        %s244 = sand.u32 %s110, 1
        %s245 = smul.addr %s244, 256
        %s246 = scalar_lea.vmem [#allocation8], %s245
        %p247 = pneg %p151
        %p248 = pneg %p148
        %s249 = sand.u32 %s138, 1
        %s250 = scalar_lea.sflag [#allocation10], %s249
        %s251 = sand.u32 %s138, 1
        %s252 = smul.addr %s251, 2
        %s253 = scalar_lea.vmem [#allocation9], %s252
        %s254 = smul.u32 32, %s30
        %s255 = smul.u32 2, %s32
        %s256 = smul.u32 32, %s32
        %s257 = smul.u32 32, %s30
        %p259 = scmp.eq.s32.totalorder %s32, 0
        // Predicated region
        $region37: #{tpu_custom_call.1} parent=27 // pred_check
          %p260 = pneg %p259
        $region38: #{tpu_custom_call.1} parent=27 // pred_check_branch
          %262 = sbr.rel (%p260) target = $region40
        $region39: #{tpu_custom_call.1} parent=27 // pred_region
          %263 = vst [vmem:[#allocation2] sm:$0xff] 0.0
          %264 = vst [vmem:[#allocation2 + $0x8] sm:$0xff] 0.0
          %265 = vst [vmem:[#allocation2 + $0x10] sm:$0xff] 0.0
          %266 = vst [vmem:[#allocation2 + $0x18] sm:$0xff] 0.0
          %267 = vst [vmem:[#allocation2 + $0x20] sm:$0xff] 0.0
          %268 = vst [vmem:[#allocation2 + $0x28] sm:$0xff] 0.0
          %269 = vst [vmem:[#allocation2 + $0x30] sm:$0xff] 0.0
          %270 = vst [vmem:[#allocation2 + $0x38] sm:$0xff] 0.0
          %271 = vst [vmem:[#allocation2 + $0x40] sm:$0xff] 0.0
          %272 = vst [vmem:[#allocation2 + $0x48] sm:$0xff] 0.0
          %273 = vst [vmem:[#allocation2 + $0x50] sm:$0xff] 0.0
          %274 = vst [vmem:[#allocation2 + $0x58] sm:$0xff] 0.0
          %275 = vst [vmem:[#allocation2 + $0x60] sm:$0xff] 0.0
          %276 = vst [vmem:[#allocation2 + $0x68] sm:$0xff] 0.0
          %277 = vst [vmem:[#allocation2 + $0x70] sm:$0xff] 0.0
          %278 = vst [vmem:[#allocation2 + $0x78] sm:$0xff] 0.0
          %279 = vst [vmem:[#allocation2 + $0x80] sm:$0xff] 0.0
          %280 = vst [vmem:[#allocation2 + $0x88] sm:$0xff] 0.0
          %281 = vst [vmem:[#allocation2 + $0x90] sm:$0xff] 0.0
          %282 = vst [vmem:[#allocation2 + $0x98] sm:$0xff] 0.0
          %283 = vst [vmem:[#allocation2 + $0xa0] sm:$0xff] 0.0
          %284 = vst [vmem:[#allocation2 + $0xa8] sm:$0xff] 0.0
          %285 = vst [vmem:[#allocation2 + $0xb0] sm:$0xff] 0.0
          %286 = vst [vmem:[#allocation2 + $0xb8] sm:$0xff] 0.0
          %287 = vst [vmem:[#allocation2 + $0xc0] sm:$0xff] 0.0
          %288 = vst [vmem:[#allocation2 + $0xc8] sm:$0xff] 0.0
          %289 = vst [vmem:[#allocation2 + $0xd0] sm:$0xff] 0.0
          %290 = vst [vmem:[#allocation2 + $0xd8] sm:$0xff] 0.0
          %291 = vst [vmem:[#allocation2 + $0xe0] sm:$0xff] 0.0
          %292 = vst [vmem:[#allocation2 + $0xe8] sm:$0xff] 0.0
          %293 = vst [vmem:[#allocation2 + $0xf0] sm:$0xff] 0.0
          %294 = vst [vmem:[#allocation2 + $0xf8] sm:$0xff] 0.0
        $region40: #{tpu_custom_call.1} parent=27 // pred_fallthru
          _
        %v295 = vld [vmem:[#allocation2] sm:$0xff]
        %v296 = vld [vmem:[#allocation2 + $0x8] sm:$0xff]
        %v297 = vld [vmem:[#allocation2 + $0x10] sm:$0xff]
        %v298 = vld [vmem:[#allocation2 + $0x18] sm:$0xff]
        %v299 = vld [vmem:[#allocation2 + $0x20] sm:$0xff]
        %v300 = vld [vmem:[#allocation2 + $0x28] sm:$0xff]
        %v301 = vld [vmem:[#allocation2 + $0x30] sm:$0xff]
        %v302 = vld [vmem:[#allocation2 + $0x38] sm:$0xff]
        %v303 = vld [vmem:[#allocation2 + $0x40] sm:$0xff]
        %v304 = vld [vmem:[#allocation2 + $0x48] sm:$0xff]
        %v305 = vld [vmem:[#allocation2 + $0x50] sm:$0xff]
        %v306 = vld [vmem:[#allocation2 + $0x58] sm:$0xff]
        %v307 = vld [vmem:[#allocation2 + $0x60] sm:$0xff]
        %v308 = vld [vmem:[#allocation2 + $0x68] sm:$0xff]
        %v309 = vld [vmem:[#allocation2 + $0x70] sm:$0xff]
        %v310 = vld [vmem:[#allocation2 + $0x78] sm:$0xff]
        %v311 = vld [vmem:[#allocation2 + $0x80] sm:$0xff]
        %v312 = vld [vmem:[#allocation2 + $0x88] sm:$0xff]
        %v313 = vld [vmem:[#allocation2 + $0x90] sm:$0xff]
        %v314 = vld [vmem:[#allocation2 + $0x98] sm:$0xff]
        %v315 = vld [vmem:[#allocation2 + $0xa0] sm:$0xff]
        %v316 = vld [vmem:[#allocation2 + $0xa8] sm:$0xff]
        %v317 = vld [vmem:[#allocation2 + $0xb0] sm:$0xff]
        %v318 = vld [vmem:[#allocation2 + $0xb8] sm:$0xff]
        %v319 = vld [vmem:[#allocation2 + $0xc0] sm:$0xff]
        %v320 = vld [vmem:[#allocation2 + $0xc8] sm:$0xff]
        %v321 = vld [vmem:[#allocation2 + $0xd0] sm:$0xff]
        %v322 = vld [vmem:[#allocation2 + $0xd8] sm:$0xff]
        %v323 = vld [vmem:[#allocation2 + $0xe0] sm:$0xff]
        %v324 = vld [vmem:[#allocation2 + $0xe8] sm:$0xff]
        %v325 = vld [vmem:[#allocation2 + $0xf0] sm:$0xff]
        %v326 = vld [vmem:[#allocation2 + $0xf8] sm:$0xff]
        %v327 = vld [vmem:[%s222] sm:$0xff]
        %v328 = vld [vmem:[%s222 + $0x8] sm:$0xff]
        %v329 = vld [vmem:[%s222 + $0x10] sm:$0xff]
        %v330 = vld [vmem:[%s222 + $0x18] sm:$0xff]
        %v331 = vld [vmem:[%s222 + $0x20] sm:$0xff]
        %v332 = vld [vmem:[%s222 + $0x28] sm:$0xff]
        %v333 = vld [vmem:[%s222 + $0x30] sm:$0xff]
        %v334 = vld [vmem:[%s222 + $0x38] sm:$0xff]
        %v335 = vld [vmem:[%s222 + $0x40] sm:$0xff]
        %v336 = vld [vmem:[%s222 + $0x48] sm:$0xff]
        %v337 = vld [vmem:[%s222 + $0x50] sm:$0xff]
        %v338 = vld [vmem:[%s222 + $0x58] sm:$0xff]
        %v339 = vld [vmem:[%s222 + $0x60] sm:$0xff]
        %v340 = vld [vmem:[%s222 + $0x68] sm:$0xff]
        %v341 = vld [vmem:[%s222 + $0x70] sm:$0xff]
        %v342 = vld [vmem:[%s222 + $0x78] sm:$0xff]
        %v343 = vld [vmem:[%s222 + $0x80] sm:$0xff]
        %v344 = vld [vmem:[%s222 + $0x88] sm:$0xff]
        %v345 = vld [vmem:[%s222 + $0x90] sm:$0xff]
        %v346 = vld [vmem:[%s222 + $0x98] sm:$0xff]
        %v347 = vld [vmem:[%s222 + $0xa0] sm:$0xff]
        %v348 = vld [vmem:[%s222 + $0xa8] sm:$0xff]
        %v349 = vld [vmem:[%s222 + $0xb0] sm:$0xff]
        %v350 = vld [vmem:[%s222 + $0xb8] sm:$0xff]
        %v351 = vld [vmem:[%s222 + $0xc0] sm:$0xff]
        %v352 = vld [vmem:[%s222 + $0xc8] sm:$0xff]
        %v353 = vld [vmem:[%s222 + $0xd0] sm:$0xff]
        %v354 = vld [vmem:[%s222 + $0xd8] sm:$0xff]
        %v355 = vld [vmem:[%s222 + $0xe0] sm:$0xff]
        %v356 = vld [vmem:[%s222 + $0xe8] sm:$0xff]
        %v357 = vld [vmem:[%s222 + $0xf0] sm:$0xff]
        %v358 = vld [vmem:[%s222 + $0xf8] sm:$0xff]
        %v359 = vld [vmem:[#allocation6] sm:$0xf]
        %v360 = vld [vmem:[#allocation6 + $0x4] sm:$0xf]
        %v361 = vld [vmem:[#allocation6 + $0x8] sm:$0xf]
        %v362 = vld [vmem:[#allocation6 + $0xc] sm:$0xf]
        %v363 = vld [vmem:[#allocation6 + $0x10] sm:$0xf]
        %v364 = vld [vmem:[#allocation6 + $0x14] sm:$0xf]
        %v365 = vld [vmem:[#allocation6 + $0x18] sm:$0xf]
        %v366 = vld [vmem:[#allocation6 + $0x1c] sm:$0xf]
        %v367 = vld [vmem:[#allocation6 + $0x20] sm:$0xf]
        %v368 = vld [vmem:[#allocation6 + $0x24] sm:$0xf]
        %v369 = vld [vmem:[#allocation6 + $0x28] sm:$0xf]
        %v370 = vld [vmem:[#allocation6 + $0x2c] sm:$0xf]
        %v371 = vld [vmem:[#allocation6 + $0x30] sm:$0xf]
        %v372 = vld [vmem:[#allocation6 + $0x34] sm:$0xf]
        %v373 = vld [vmem:[#allocation6 + $0x38] sm:$0xf]
        %v374 = vld [vmem:[#allocation6 + $0x3c] sm:$0xf]
        %v375 = vld [vmem:[#allocation6 + $0x40] sm:$0xf]
        %v376 = vld [vmem:[#allocation6 + $0x44] sm:$0xf]
        %v377 = vld [vmem:[#allocation6 + $0x48] sm:$0xf]
        %v378 = vld [vmem:[#allocation6 + $0x4c] sm:$0xf]
        %v379 = vld [vmem:[#allocation6 + $0x50] sm:$0xf]
        %v380 = vld [vmem:[#allocation6 + $0x54] sm:$0xf]
        %v381 = vld [vmem:[#allocation6 + $0x58] sm:$0xf]
        %v382 = vld [vmem:[#allocation6 + $0x5c] sm:$0xf]
        %v383 = vld [vmem:[#allocation6 + $0x60] sm:$0xf]
        %v384 = vld [vmem:[#allocation6 + $0x64] sm:$0xf]
        %v385 = vld [vmem:[#allocation6 + $0x68] sm:$0xf]
        %v386 = vld [vmem:[#allocation6 + $0x6c] sm:$0xf]
        %v387 = vld [vmem:[#allocation6 + $0x70] sm:$0xf]
        %v388 = vld [vmem:[#allocation6 + $0x74] sm:$0xf]
        %v389 = vld [vmem:[#allocation6 + $0x78] sm:$0xf]
        %v390 = vld [vmem:[#allocation6 + $0x7c] sm:$0xf]
        %v423 = vunpack.c.l.b16 %v327
        %v424 = vunpack.c.h.b16 %v327
        %v425 = vunpack.c.l.b16 %v328
        %v426 = vunpack.c.h.b16 %v328
        %v427 = vunpack.c.l.b16 %v329
        %v428 = vunpack.c.h.b16 %v329
        %v429 = vunpack.c.l.b16 %v330
        %v430 = vunpack.c.h.b16 %v330
        %v431 = vunpack.c.l.b16 %v331
        %v432 = vunpack.c.h.b16 %v331
        %v433 = vunpack.c.l.b16 %v332
        %v434 = vunpack.c.h.b16 %v332
        %v435 = vunpack.c.l.b16 %v333
        %v436 = vunpack.c.h.b16 %v333
        %v437 = vunpack.c.l.b16 %v334
        %v438 = vunpack.c.h.b16 %v334
        %v439 = vunpack.c.l.b16 %v335
        %v440 = vunpack.c.h.b16 %v335
        %v441 = vunpack.c.l.b16 %v336
        %v442 = vunpack.c.h.b16 %v336
        %v443 = vunpack.c.l.b16 %v337
        %v444 = vunpack.c.h.b16 %v337
        %v445 = vunpack.c.l.b16 %v338
        %v446 = vunpack.c.h.b16 %v338
        %v447 = vunpack.c.l.b16 %v339
        %v448 = vunpack.c.h.b16 %v339
        %v449 = vunpack.c.l.b16 %v340
        %v450 = vunpack.c.h.b16 %v340
        %v451 = vunpack.c.l.b16 %v341
        %v452 = vunpack.c.h.b16 %v341
        %v453 = vunpack.c.l.b16 %v342
        %v454 = vunpack.c.h.b16 %v342
        %v455 = vunpack.c.l.b16 %v343
        %v456 = vunpack.c.h.b16 %v343
        %v457 = vunpack.c.l.b16 %v344
        %v458 = vunpack.c.h.b16 %v344
        %v459 = vunpack.c.l.b16 %v345
        %v460 = vunpack.c.h.b16 %v345
        %v461 = vunpack.c.l.b16 %v346
        %v462 = vunpack.c.h.b16 %v346
        %v463 = vunpack.c.l.b16 %v347
        %v464 = vunpack.c.h.b16 %v347
        %v465 = vunpack.c.l.b16 %v348
        %v466 = vunpack.c.h.b16 %v348
        %v467 = vunpack.c.l.b16 %v349
        %v468 = vunpack.c.h.b16 %v349
        %v469 = vunpack.c.l.b16 %v350
        %v470 = vunpack.c.h.b16 %v350
        %v471 = vunpack.c.l.b16 %v351
        %v472 = vunpack.c.h.b16 %v351
        %v473 = vunpack.c.l.b16 %v352
        %v474 = vunpack.c.h.b16 %v352
        %v475 = vunpack.c.l.b16 %v353
        %v476 = vunpack.c.h.b16 %v353
        %v477 = vunpack.c.l.b16 %v354
        %v478 = vunpack.c.h.b16 %v354
        %v479 = vunpack.c.l.b16 %v355
        %v480 = vunpack.c.h.b16 %v355
        %v481 = vunpack.c.l.b16 %v356
        %v482 = vunpack.c.h.b16 %v356
        %v483 = vunpack.c.l.b16 %v357
        %v484 = vunpack.c.h.b16 %v357
        %v485 = vunpack.c.l.b16 %v358
        %v486 = vunpack.c.h.b16 %v358
        %v487 = vpack.c.b16 %v425, %v423
        %v488 = vpack.c.b16 %v426, %v424
        %v489 = vpack.c.b16 %v429, %v427
        %v490 = vpack.c.b16 %v430, %v428
        %v491 = vpack.c.b16 %v433, %v431
        %v492 = vpack.c.b16 %v434, %v432
        %v493 = vpack.c.b16 %v437, %v435
        %v494 = vpack.c.b16 %v438, %v436
        %v495 = vpack.c.b16 %v441, %v439
        %v496 = vpack.c.b16 %v442, %v440
        %v497 = vpack.c.b16 %v445, %v443
        %v498 = vpack.c.b16 %v446, %v444
        %v499 = vpack.c.b16 %v449, %v447
        %v500 = vpack.c.b16 %v450, %v448
        %v501 = vpack.c.b16 %v453, %v451
        %v502 = vpack.c.b16 %v454, %v452
        %v503 = vpack.c.b16 %v457, %v455
        %v504 = vpack.c.b16 %v458, %v456
        %v505 = vpack.c.b16 %v461, %v459
        %v506 = vpack.c.b16 %v462, %v460
        %v507 = vpack.c.b16 %v465, %v463
        %v508 = vpack.c.b16 %v466, %v464
        %v509 = vpack.c.b16 %v469, %v467
        %v510 = vpack.c.b16 %v470, %v468
        %v511 = vpack.c.b16 %v473, %v471
        %v512 = vpack.c.b16 %v474, %v472
        %v513 = vpack.c.b16 %v477, %v475
        %v514 = vpack.c.b16 %v478, %v476
        %v515 = vpack.c.b16 %v481, %v479
        %v516 = vpack.c.b16 %v482, %v480
        %v517 = vpack.c.b16 %v485, %v483
        %v518 = vpack.c.b16 %v486, %v484
        %v583 = vunpack.c.l.b16 %v359
        %v584 = vunpack.c.l.b16 %v360
        %v585 = vunpack.c.l.b16 %v361
        %v586 = vunpack.c.l.b16 %v362
        %v587 = vunpack.c.l.b16 %v363
        %v588 = vunpack.c.l.b16 %v364
        %v589 = vunpack.c.l.b16 %v365
        %v590 = vunpack.c.l.b16 %v366
        %v591 = vunpack.c.l.b16 %v367
        %v592 = vunpack.c.l.b16 %v368
        %v593 = vunpack.c.l.b16 %v369
        %v594 = vunpack.c.l.b16 %v370
        %v595 = vunpack.c.l.b16 %v371
        %v596 = vunpack.c.l.b16 %v372
        %v597 = vunpack.c.l.b16 %v373
        %v598 = vunpack.c.l.b16 %v374
        %v599 = vunpack.c.l.b16 %v375
        %v600 = vunpack.c.l.b16 %v376
        %v601 = vunpack.c.l.b16 %v377
        %v602 = vunpack.c.l.b16 %v378
        %v603 = vunpack.c.l.b16 %v379
        %v604 = vunpack.c.l.b16 %v380
        %v605 = vunpack.c.l.b16 %v381
        %v606 = vunpack.c.l.b16 %v382
        %v607 = vunpack.c.l.b16 %v383
        %v608 = vunpack.c.l.b16 %v384
        %v609 = vunpack.c.l.b16 %v385
        %v610 = vunpack.c.l.b16 %v386
        %v611 = vunpack.c.l.b16 %v387
        %v612 = vunpack.c.l.b16 %v388
        %v613 = vunpack.c.l.b16 %v389
        %v614 = vunpack.c.l.b16 %v390
        %v615 = vpack.c.b16 %v584, %v583
        %v616 = vpack.c.b16 %v586, %v585
        %v617 = vpack.c.b16 %v588, %v587
        %v618 = vpack.c.b16 %v590, %v589
        %v619 = vpack.c.b16 %v592, %v591
        %v620 = vpack.c.b16 %v594, %v593
        %v621 = vpack.c.b16 %v596, %v595
        %v622 = vpack.c.b16 %v598, %v597
        %v623 = vpack.c.b16 %v600, %v599
        %v624 = vpack.c.b16 %v602, %v601
        %v625 = vpack.c.b16 %v604, %v603
        %v626 = vpack.c.b16 %v606, %v605
        %v627 = vpack.c.b16 %v608, %v607
        %v628 = vpack.c.b16 %v610, %v609
        %v629 = vpack.c.b16 %v612, %v611
        %v630 = vpack.c.b16 %v614, %v613
        %647 = vmatprep.subr.bf16.mxu0 0
        %648 = vmatpush1.bf16.msra.mxu0 %v615
        %649 = vmatprep.subr.bf16.mxu0 0
        %650 = vmatpush1.bf16.msra.mxu0 %v616
        %651 = vmatprep.subr.bf16.mxu0 0
        %652 = vmatpush1.bf16.msra.mxu0 %v617
        %653 = vmatprep.subr.bf16.mxu0 0
        %654 = vmatpush1.bf16.msra.mxu0 %v618
        %655 = vmatprep.subr.bf16.mxu0 0
        %656 = vmatpush1.bf16.msra.mxu0 %v619
        %657 = vmatprep.subr.bf16.mxu0 0
        %658 = vmatpush1.bf16.msra.mxu0 %v620
        %659 = vmatprep.subr.bf16.mxu0 0
        %660 = vmatpush1.bf16.msra.mxu0 %v621
        %661 = vmatprep.subr.bf16.mxu0 0
        %662 = vmatpush1.bf16.msra.mxu0 %v622
        %663 = vmatprep.subr.bf16.mxu0 0
        %664 = vmatpush1.bf16.msra.mxu0 %v623
        %665 = vmatprep.subr.bf16.mxu0 0
        %666 = vmatpush1.bf16.msra.mxu0 %v624
        %667 = vmatprep.subr.bf16.mxu0 0
        %668 = vmatpush1.bf16.msra.mxu0 %v625
        %669 = vmatprep.subr.bf16.mxu0 0
        %670 = vmatpush1.bf16.msra.mxu0 %v626
        %671 = vmatprep.subr.bf16.mxu0 0
        %672 = vmatpush1.bf16.msra.mxu0 %v627
        %673 = vmatprep.subr.bf16.mxu0 0
        %674 = vmatpush1.bf16.msra.mxu0 %v628
        %675 = vmatprep.subr.bf16.mxu0 0
        %676 = vmatpush1.bf16.msra.mxu0 %v629
        %677 = vmatprep.subr.bf16.mxu0 0
        %678 = vmatpush1.bf16.msra.mxu0 %v630
        %679 = vmatprep.mubr.bf16.mxu0 %v488
        %680 = vmatmul.mubr.bf16.gmra.mrb[0].mxu0 %v487
        %v681 = vpop.f32.mrb[0].mxu0
        %v682 = vadd.f32 0.0, %v681
        %v683 = vpop.f32.mrb[0].mxu0
        %v684 = vpop.f32.mrb[0].mxu0
        %v685 = vadd.f32 0.0, %v684
        %v686 = vpop.f32.mrb[0].mxu0
        %687 = vmatprep.mubr.bf16.mxu0 %v490
        %688 = vmatmul.mubr.bf16.gmra.mrb[0].mxu0 %v489
        %v689 = vpop.f32.mrb[0].mxu0
        %v690 = vadd.f32 0.0, %v689
        %v691 = vpop.f32.mrb[0].mxu0
        %v692 = vpop.f32.mrb[0].mxu0
        %v693 = vadd.f32 0.0, %v692
        %v694 = vpop.f32.mrb[0].mxu0
        %695 = vmatprep.mubr.bf16.mxu0 %v492
        %696 = vmatmul.mubr.bf16.gmra.mrb[0].mxu0 %v491
        %v697 = vpop.f32.mrb[0].mxu0
        %v698 = vadd.f32 0.0, %v697
        %v699 = vpop.f32.mrb[0].mxu0
        %v700 = vpop.f32.mrb[0].mxu0
        %v701 = vadd.f32 0.0, %v700
        %v702 = vpop.f32.mrb[0].mxu0
        %703 = vmatprep.mubr.bf16.mxu0 %v494
        %704 = vmatmul.mubr.bf16.gmra.mrb[0].mxu0 %v493
        %v705 = vpop.f32.mrb[0].mxu0
        %v706 = vadd.f32 0.0, %v705
        %v707 = vpop.f32.mrb[0].mxu0
        %v708 = vpop.f32.mrb[0].mxu0
        %v709 = vadd.f32 0.0, %v708
        %v710 = vpop.f32.mrb[0].mxu0
        %711 = vmatprep.mubr.bf16.mxu0 %v496
        %712 = vmatmul.mubr.bf16.gmra.mrb[0].mxu0 %v495
        %v713 = vpop.f32.mrb[0].mxu0
        %v714 = vadd.f32 0.0, %v713
        %v715 = vpop.f32.mrb[0].mxu0
        %v716 = vpop.f32.mrb[0].mxu0
        %v717 = vadd.f32 0.0, %v716
        %v718 = vpop.f32.mrb[0].mxu0
        %719 = vmatprep.mubr.bf16.mxu0 %v498
        %720 = vmatmul.mubr.bf16.gmra.mrb[0].mxu0 %v497
        %v721 = vpop.f32.mrb[0].mxu0
        %v722 = vadd.f32 0.0, %v721
        %v723 = vpop.f32.mrb[0].mxu0
        %v724 = vpop.f32.mrb[0].mxu0
        %v725 = vadd.f32 0.0, %v724
        %v726 = vpop.f32.mrb[0].mxu0
        %727 = vmatprep.mubr.bf16.mxu0 %v500
        %728 = vmatmul.mubr.bf16.gmra.mrb[0].mxu0 %v499
        %v729 = vpop.f32.mrb[0].mxu0
        %v730 = vadd.f32 0.0, %v729
        %v731 = vpop.f32.mrb[0].mxu0
        %v732 = vpop.f32.mrb[0].mxu0
        %v733 = vadd.f32 0.0, %v732
        %v734 = vpop.f32.mrb[0].mxu0
        %735 = vmatprep.mubr.bf16.mxu0 %v502
        %736 = vmatmul.mubr.bf16.gmra.mrb[0].mxu0 %v501
        %v737 = vpop.f32.mrb[0].mxu0
        %v738 = vadd.f32 0.0, %v737
        %v739 = vpop.f32.mrb[0].mxu0
        %v740 = vpop.f32.mrb[0].mxu0
        %v741 = vadd.f32 0.0, %v740
        %v742 = vpop.f32.mrb[0].mxu0
        %743 = vmatprep.mubr.bf16.mxu0 %v504
        %744 = vmatmul.mubr.bf16.gmra.mrb[0].mxu0 %v503
        %v745 = vpop.f32.mrb[0].mxu0
        %v746 = vadd.f32 0.0, %v745
        %v747 = vpop.f32.mrb[0].mxu0
        %v748 = vpop.f32.mrb[0].mxu0
        %v749 = vadd.f32 0.0, %v748
        %v750 = vpop.f32.mrb[0].mxu0
        %751 = vmatprep.mubr.bf16.mxu0 %v506
        %752 = vmatmul.mubr.bf16.gmra.mrb[0].mxu0 %v505
        %v753 = vpop.f32.mrb[0].mxu0
        %v754 = vadd.f32 0.0, %v753
        %v755 = vpop.f32.mrb[0].mxu0
        %v756 = vpop.f32.mrb[0].mxu0
        %v757 = vadd.f32 0.0, %v756
        %v758 = vpop.f32.mrb[0].mxu0
        %759 = vmatprep.mubr.bf16.mxu0 %v508
        %760 = vmatmul.mubr.bf16.gmra.mrb[0].mxu0 %v507
        %v761 = vpop.f32.mrb[0].mxu0
        %v762 = vadd.f32 0.0, %v761
        %v763 = vpop.f32.mrb[0].mxu0
        %v764 = vpop.f32.mrb[0].mxu0
        %v765 = vadd.f32 0.0, %v764
        %v766 = vpop.f32.mrb[0].mxu0
        %767 = vmatprep.mubr.bf16.mxu0 %v510
        %768 = vmatmul.mubr.bf16.gmra.mrb[0].mxu0 %v509
        %v769 = vpop.f32.mrb[0].mxu0
        %v770 = vadd.f32 0.0, %v769
        %v771 = vpop.f32.mrb[0].mxu0
        %v772 = vpop.f32.mrb[0].mxu0
        %v773 = vadd.f32 0.0, %v772
        %v774 = vpop.f32.mrb[0].mxu0
        %775 = vmatprep.mubr.bf16.mxu0 %v512
        %776 = vmatmul.mubr.bf16.gmra.mrb[0].mxu0 %v511
        %v777 = vpop.f32.mrb[0].mxu0
        %v778 = vadd.f32 0.0, %v777
        %v779 = vpop.f32.mrb[0].mxu0
        %v780 = vpop.f32.mrb[0].mxu0
        %v781 = vadd.f32 0.0, %v780
        %v782 = vpop.f32.mrb[0].mxu0
        %783 = vmatprep.mubr.bf16.mxu0 %v514
        %784 = vmatmul.mubr.bf16.gmra.mrb[0].mxu0 %v513
        %v785 = vpop.f32.mrb[0].mxu0
        %v786 = vadd.f32 0.0, %v785
        %v787 = vpop.f32.mrb[0].mxu0
        %v788 = vpop.f32.mrb[0].mxu0
        %v789 = vadd.f32 0.0, %v788
        %v790 = vpop.f32.mrb[0].mxu0
        %791 = vmatprep.mubr.bf16.mxu0 %v516
        %792 = vmatmul.mubr.bf16.gmra.mrb[0].mxu0 %v515
        %v793 = vpop.f32.mrb[0].mxu0
        %v794 = vadd.f32 0.0, %v793
        %v795 = vpop.f32.mrb[0].mxu0
        %v796 = vpop.f32.mrb[0].mxu0
        %v797 = vadd.f32 0.0, %v796
        %v798 = vpop.f32.mrb[0].mxu0
        %799 = vmatprep.mubr.bf16.mxu0 %v518
        %800 = vmatmul.mubr.bf16.gmra.mrb[0].mxu0 %v517
        %v801 = vpop.f32.mrb[0].mxu0
        %v802 = vadd.f32 0.0, %v801
        %v803 = vpop.f32.mrb[0].mxu0
        %v804 = vpop.f32.mrb[0].mxu0
        %v805 = vadd.f32 0.0, %v804
        %v806 = vpop.f32.mrb[0].mxu0
        %807 = vdwg.mxu0
        %v808 = vadd.f32 %v295, %v682
        %v809 = vadd.f32 %v296, %v685
        %v810 = vadd.f32 %v297, %v690
        %v811 = vadd.f32 %v298, %v693
        %v812 = vadd.f32 %v299, %v698
        %v813 = vadd.f32 %v300, %v701
        %v814 = vadd.f32 %v301, %v706
        %v815 = vadd.f32 %v302, %v709
        %v816 = vadd.f32 %v303, %v714
        %v817 = vadd.f32 %v304, %v717
        %v818 = vadd.f32 %v305, %v722
        %v819 = vadd.f32 %v306, %v725
        %v820 = vadd.f32 %v307, %v730
        %v821 = vadd.f32 %v308, %v733
        %v822 = vadd.f32 %v309, %v738
        %v823 = vadd.f32 %v310, %v741
        %v824 = vadd.f32 %v311, %v746
        %v825 = vadd.f32 %v312, %v749
        %v826 = vadd.f32 %v313, %v754
        %v827 = vadd.f32 %v314, %v757
        %v828 = vadd.f32 %v315, %v762
        %v829 = vadd.f32 %v316, %v765
        %v830 = vadd.f32 %v317, %v770
        %v831 = vadd.f32 %v318, %v773
        %v832 = vadd.f32 %v319, %v778
        %v833 = vadd.f32 %v320, %v781
        %v834 = vadd.f32 %v321, %v786
        %v835 = vadd.f32 %v322, %v789
        %v836 = vadd.f32 %v323, %v794
        %v837 = vadd.f32 %v324, %v797
        %v838 = vadd.f32 %v325, %v802
        %v839 = vadd.f32 %v326, %v805
        %840 = vst [vmem:[#allocation2] sm:$0xff] %v808
        %841 = vst [vmem:[#allocation2 + $0x8] sm:$0xff] %v809
        %842 = vst [vmem:[#allocation2 + $0x10] sm:$0xff] %v810
        %843 = vst [vmem:[#allocation2 + $0x18] sm:$0xff] %v811
        %844 = vst [vmem:[#allocation2 + $0x20] sm:$0xff] %v812
        %845 = vst [vmem:[#allocation2 + $0x28] sm:$0xff] %v813
        %846 = vst [vmem:[#allocation2 + $0x30] sm:$0xff] %v814
        %847 = vst [vmem:[#allocation2 + $0x38] sm:$0xff] %v815
        %848 = vst [vmem:[#allocation2 + $0x40] sm:$0xff] %v816
        %849 = vst [vmem:[#allocation2 + $0x48] sm:$0xff] %v817
        %850 = vst [vmem:[#allocation2 + $0x50] sm:$0xff] %v818
        %851 = vst [vmem:[#allocation2 + $0x58] sm:$0xff] %v819
        %852 = vst [vmem:[#allocation2 + $0x60] sm:$0xff] %v820
        %853 = vst [vmem:[#allocation2 + $0x68] sm:$0xff] %v821
        %854 = vst [vmem:[#allocation2 + $0x70] sm:$0xff] %v822
        %855 = vst [vmem:[#allocation2 + $0x78] sm:$0xff] %v823
        %856 = vst [vmem:[#allocation2 + $0x80] sm:$0xff] %v824
        %857 = vst [vmem:[#allocation2 + $0x88] sm:$0xff] %v825
        %858 = vst [vmem:[#allocation2 + $0x90] sm:$0xff] %v826
        %859 = vst [vmem:[#allocation2 + $0x98] sm:$0xff] %v827
        %860 = vst [vmem:[#allocation2 + $0xa0] sm:$0xff] %v828
        %861 = vst [vmem:[#allocation2 + $0xa8] sm:$0xff] %v829
        %862 = vst [vmem:[#allocation2 + $0xb0] sm:$0xff] %v830
        %863 = vst [vmem:[#allocation2 + $0xb8] sm:$0xff] %v831
        %864 = vst [vmem:[#allocation2 + $0xc0] sm:$0xff] %v832
        %865 = vst [vmem:[#allocation2 + $0xc8] sm:$0xff] %v833
        %866 = vst [vmem:[#allocation2 + $0xd0] sm:$0xff] %v834
        %867 = vst [vmem:[#allocation2 + $0xd8] sm:$0xff] %v835
        %868 = vst [vmem:[#allocation2 + $0xe0] sm:$0xff] %v836
        %869 = vst [vmem:[#allocation2 + $0xe8] sm:$0xff] %v837
        %870 = vst [vmem:[#allocation2 + $0xf0] sm:$0xff] %v838
        %871 = vst [vmem:[#allocation2 + $0xf8] sm:$0xff] %v839
        // Predicated region
        $region41: #{tpu_custom_call.1} parent=27 // pred_check
          %p872 = pneg %p259
        $region42: #{tpu_custom_call.1} parent=27 // pred_check_branch
          %874 = sbr.rel (%p872) target = $region44
        $region43: #{tpu_custom_call.1} parent=27 // pred_region
          %v875 = vld [vmem:[#allocation2] sm:$0xff]
          %v876 = vld [vmem:[#allocation2 + $0x8] sm:$0xff]
          %v877 = vld [vmem:[#allocation2 + $0x10] sm:$0xff]
          %v878 = vld [vmem:[#allocation2 + $0x18] sm:$0xff]
          %v879 = vld [vmem:[#allocation2 + $0x20] sm:$0xff]
          %v880 = vld [vmem:[#allocation2 + $0x28] sm:$0xff]
          %v881 = vld [vmem:[#allocation2 + $0x30] sm:$0xff]
          %v882 = vld [vmem:[#allocation2 + $0x38] sm:$0xff]
          %v883 = vld [vmem:[#allocation2 + $0x40] sm:$0xff]
          %v884 = vld [vmem:[#allocation2 + $0x48] sm:$0xff]
          %v885 = vld [vmem:[#allocation2 + $0x50] sm:$0xff]
          %v886 = vld [vmem:[#allocation2 + $0x58] sm:$0xff]
          %v887 = vld [vmem:[#allocation2 + $0x60] sm:$0xff]
          %v888 = vld [vmem:[#allocation2 + $0x68] sm:$0xff]
          %v889 = vld [vmem:[#allocation2 + $0x70] sm:$0xff]
          %v890 = vld [vmem:[#allocation2 + $0x78] sm:$0xff]
          %v891 = vld [vmem:[#allocation2 + $0x80] sm:$0xff]
          %v892 = vld [vmem:[#allocation2 + $0x88] sm:$0xff]
          %v893 = vld [vmem:[#allocation2 + $0x90] sm:$0xff]
          %v894 = vld [vmem:[#allocation2 + $0x98] sm:$0xff]
          %v895 = vld [vmem:[#allocation2 + $0xa0] sm:$0xff]
          %v896 = vld [vmem:[#allocation2 + $0xa8] sm:$0xff]
          %v897 = vld [vmem:[#allocation2 + $0xb0] sm:$0xff]
          %v898 = vld [vmem:[#allocation2 + $0xb8] sm:$0xff]
          %v899 = vld [vmem:[#allocation2 + $0xc0] sm:$0xff]
          %v900 = vld [vmem:[#allocation2 + $0xc8] sm:$0xff]
          %v901 = vld [vmem:[#allocation2 + $0xd0] sm:$0xff]
          %v902 = vld [vmem:[#allocation2 + $0xd8] sm:$0xff]
          %v903 = vld [vmem:[#allocation2 + $0xe0] sm:$0xff]
          %v904 = vld [vmem:[#allocation2 + $0xe8] sm:$0xff]
          %v905 = vld [vmem:[#allocation2 + $0xf0] sm:$0xff]
          %v906 = vld [vmem:[#allocation2 + $0xf8] sm:$0xff]
          %907 = vst [vmem:[%s246] sm:$0xff] %v875
          %908 = vst [vmem:[%s246 + $0x8] sm:$0xff] %v876
          %909 = vst [vmem:[%s246 + $0x10] sm:$0xff] %v877
          %910 = vst [vmem:[%s246 + $0x18] sm:$0xff] %v878
          %911 = vst [vmem:[%s246 + $0x20] sm:$0xff] %v879
          %912 = vst [vmem:[%s246 + $0x28] sm:$0xff] %v880
          %913 = vst [vmem:[%s246 + $0x30] sm:$0xff] %v881
          %914 = vst [vmem:[%s246 + $0x38] sm:$0xff] %v882
          %915 = vst [vmem:[%s246 + $0x40] sm:$0xff] %v883
          %916 = vst [vmem:[%s246 + $0x48] sm:$0xff] %v884
          %917 = vst [vmem:[%s246 + $0x50] sm:$0xff] %v885
          %918 = vst [vmem:[%s246 + $0x58] sm:$0xff] %v886
          %919 = vst [vmem:[%s246 + $0x60] sm:$0xff] %v887
          %920 = vst [vmem:[%s246 + $0x68] sm:$0xff] %v888
          %921 = vst [vmem:[%s246 + $0x70] sm:$0xff] %v889
          %922 = vst [vmem:[%s246 + $0x78] sm:$0xff] %v890
          %923 = vst [vmem:[%s246 + $0x80] sm:$0xff] %v891
          %924 = vst [vmem:[%s246 + $0x88] sm:$0xff] %v892
          %925 = vst [vmem:[%s246 + $0x90] sm:$0xff] %v893
          %926 = vst [vmem:[%s246 + $0x98] sm:$0xff] %v894
          %927 = vst [vmem:[%s246 + $0xa0] sm:$0xff] %v895
          %928 = vst [vmem:[%s246 + $0xa8] sm:$0xff] %v896
          %929 = vst [vmem:[%s246 + $0xb0] sm:$0xff] %v897
          %930 = vst [vmem:[%s246 + $0xb8] sm:$0xff] %v898
          %931 = vst [vmem:[%s246 + $0xc0] sm:$0xff] %v899
          %932 = vst [vmem:[%s246 + $0xc8] sm:$0xff] %v900
          %933 = vst [vmem:[%s246 + $0xd0] sm:$0xff] %v901
          %934 = vst [vmem:[%s246 + $0xd8] sm:$0xff] %v902
          %935 = vst [vmem:[%s246 + $0xe0] sm:$0xff] %v903
          %936 = vst [vmem:[%s246 + $0xe8] sm:$0xff] %v904
          %937 = vst [vmem:[%s246 + $0xf0] sm:$0xff] %v905
          %938 = vst [vmem:[%s246 + $0xf8] sm:$0xff] %v906
          %v939 = vadd.f32 %v875, %v876
          %v940 = vadd.f32 %v939, %v877
          %v941 = vadd.f32 %v940, %v878
          %v942 = vadd.f32 %v941, %v879
          %v943 = vadd.f32 %v942, %v880
          %v944 = vadd.f32 %v943, %v881
          %v945 = vadd.f32 %v944, %v882
          %v946 = vadd.f32 %v945, %v883
          %v947 = vadd.f32 %v946, %v884
          %v948 = vadd.f32 %v947, %v885
          %v949 = vadd.f32 %v948, %v886
          %v950 = vadd.f32 %v949, %v887
          %v951 = vadd.f32 %v950, %v888
          %v952 = vadd.f32 %v951, %v889
          %v953 = vadd.f32 %v952, %v890
          %v954 = vadd.f32 %v953, %v891
          %v955 = vadd.f32 %v954, %v892
          %v956 = vadd.f32 %v955, %v893
          %v957 = vadd.f32 %v956, %v894
          %v958 = vadd.f32 %v957, %v895
          %v959 = vadd.f32 %v958, %v896
          %v960 = vadd.f32 %v959, %v897
          %v961 = vadd.f32 %v960, %v898
          %v962 = vadd.f32 %v961, %v899
          %v963 = vadd.f32 %v962, %v900
          %v964 = vadd.f32 %v963, %v901
          %v965 = vadd.f32 %v964, %v902
          %v966 = vadd.f32 %v965, %v903
          %v967 = vadd.f32 %v966, %v904
          %v968 = vadd.f32 %v967, %v905
          %v969 = vadd.f32 %v968, %v906
          %v970 = vrot.slane %v969, 4
          %v971 = vadd.f32 %v969, %v970
          %v972 = vrot.slane %v971, 2
          %v973 = vadd.f32 %v971, %v972
          %v974 = vrot.slane %v973, 1
          %v975 = vadd.f32 %v973, %v974
          %976 = vst [vmem:[%s253] sm:$0x1] %v975
          %v977 = vmul.f32 %v875, %v875
          %v978 = vmul.f32 %v876, %v876
          %v979 = vmul.f32 %v877, %v877
          %v980 = vmul.f32 %v878, %v878
          %v981 = vmul.f32 %v879, %v879
          %v982 = vmul.f32 %v880, %v880
          %v983 = vmul.f32 %v881, %v881
          %v984 = vmul.f32 %v882, %v882
          %v985 = vmul.f32 %v883, %v883
          %v986 = vmul.f32 %v884, %v884
          %v987 = vmul.f32 %v885, %v885
          %v988 = vmul.f32 %v886, %v886
          %v989 = vmul.f32 %v887, %v887
          %v990 = vmul.f32 %v888, %v888
          %v991 = vmul.f32 %v889, %v889
          %v992 = vmul.f32 %v890, %v890
          %v993 = vmul.f32 %v891, %v891
          %v994 = vmul.f32 %v892, %v892
          %v995 = vmul.f32 %v893, %v893
          %v996 = vmul.f32 %v894, %v894
          %v997 = vmul.f32 %v895, %v895
          %v998 = vmul.f32 %v896, %v896
          %v999 = vmul.f32 %v897, %v897
          %v1000 = vmul.f32 %v898, %v898
          %v1001 = vmul.f32 %v899, %v899
          %v1002 = vmul.f32 %v900, %v900
          %v1003 = vmul.f32 %v901, %v901
          %v1004 = vmul.f32 %v902, %v902
          %v1005 = vmul.f32 %v903, %v903
          %v1006 = vmul.f32 %v904, %v904
          %v1007 = vmul.f32 %v905, %v905
          %v1008 = vmul.f32 %v906, %v906
          %v1009 = vadd.f32 %v977, %v978
          %v1010 = vadd.f32 %v1009, %v979
          %v1011 = vadd.f32 %v1010, %v980
          %v1012 = vadd.f32 %v1011, %v981
          %v1013 = vadd.f32 %v1012, %v982
          %v1014 = vadd.f32 %v1013, %v983
          %v1015 = vadd.f32 %v1014, %v984
          %v1016 = vadd.f32 %v1015, %v985
          %v1017 = vadd.f32 %v1016, %v986
          %v1018 = vadd.f32 %v1017, %v987
          %v1019 = vadd.f32 %v1018, %v988
          %v1020 = vadd.f32 %v1019, %v989
          %v1021 = vadd.f32 %v1020, %v990
          %v1022 = vadd.f32 %v1021, %v991
          %v1023 = vadd.f32 %v1022, %v992
          %v1024 = vadd.f32 %v1023, %v993
          %v1025 = vadd.f32 %v1024, %v994
          %v1026 = vadd.f32 %v1025, %v995
          %v1027 = vadd.f32 %v1026, %v996
          %v1028 = vadd.f32 %v1027, %v997
          %v1029 = vadd.f32 %v1028, %v998
          %v1030 = vadd.f32 %v1029, %v999
          %v1031 = vadd.f32 %v1030, %v1000
          %v1032 = vadd.f32 %v1031, %v1001
          %v1033 = vadd.f32 %v1032, %v1002
          %v1034 = vadd.f32 %v1033, %v1003
          %v1035 = vadd.f32 %v1034, %v1004
          %v1036 = vadd.f32 %v1035, %v1005
          %v1037 = vadd.f32 %v1036, %v1006
          %v1038 = vadd.f32 %v1037, %v1007
          %v1039 = vadd.f32 %v1038, %v1008
          %v1040 = vrot.slane %v1039, 4
          %v1041 = vadd.f32 %v1039, %v1040
          %v1042 = vrot.slane %v1041, 2
          %v1043 = vadd.f32 %v1041, %v1042
          %v1044 = vrot.slane %v1043, 1
          %v1045 = vadd.f32 %v1043, %v1044
          %1046 = vst [vmem:[%s253 + $0x1] sm:$0x1] %v1045
        $region44: #{tpu_custom_call.1} parent=27 // pred_fallthru
          _
        %s1047 = sand.u32 %s110, 1
        %s1048 = scalar_lea.sflag [#allocation5], %s1047
        %s1049 = sand.u32 %s110, 1
        %s1050 = smul.addr %s1049, 256
        %s1051 = scalar_lea.vmem [#allocation8], %s1050
        %s1052 = sand.u32 %s138, 1
        %s1053 = scalar_lea.sflag [#allocation10], %s1052
        %s1054 = sand.u32 %s138, 1
        %s1055 = smul.addr %s1054, 2
        %s1056 = scalar_lea.vmem [#allocation9], %s1055
        // Predicated region
        $region45: #{tpu_custom_call.1} parent=27 // pred_check
          %p1057 = pneg %p120
        $region46: #{tpu_custom_call.1} parent=27 // pred_check_branch
          %1059 = sbr.rel (%p1057) target = $region48
        $region47: #{tpu_custom_call.1} parent=27 // pred_region
          %s1060 = smul.u32 32, %s30
          %s1062 = ssub.s32 4096, 4096
          %1063 = vsyncadd %s1048, %s1062
          %s1064 = sadd.s32 %s31, %s1060
          %s1065 = smul.addr %s1064, 128
          %s1066 = scalar_lea.hbm %s2, %s1065
          %s1067 = sshll.u32 %s1051, 4
          %s1068 = int_to_ptr.vmem [resolvable:$true] %s1067
          %1073 = dma.vmem_to_hbm [thread:$0]  %s1068, 4096, %s1066, %s1048, 128, 128, 8
        $region48: #{tpu_custom_call.1} parent=27 // pred_fallthru
          _
        // Predicated region
        $region49: #{tpu_custom_call.1} parent=27 // pred_check
          %p1074 = pneg %p148
        $region50: #{tpu_custom_call.1} parent=27 // pred_check_branch
          %1076 = sbr.rel (%p1074) target = $region52
        $region51: #{tpu_custom_call.1} parent=27 // pred_region
          %s1078 = ssub.s32 32, 32
          %1079 = vsyncadd %s1053, %s1078
          %s1080 = sadd.s32 %s31, %s30
          %s1081 = smul.addr %s1080, 32
          %s1082 = scalar_lea.hbm %s3, %s1081
          %s1084 = sshll.u32 %s1056, 4
          %s1085 = int_to_ptr.vmem [resolvable:$true] %s1084
          %1087 = dma.vmem_to_hbm [thread:$0]  %s1085, 32, %s1082, %s1053
        $region52: #{tpu_custom_call.1} parent=27 // pred_fallthru
          _
      $region28: #{tpu_custom_call.1} parent=5 // pred_fallthru
        _
      %p1088 = scmp.le.s32.totalorder 2, %s20
      // Predicated region
      $region53: #{tpu_custom_call.1} parent=5 // pred_check
        %p1089 = pneg %p1088
      $region54: #{tpu_custom_call.1} parent=5 // pred_check_branch
        %1091 = sbr.rel (%p1089) target = $region56
      $region55: #{tpu_custom_call.1} parent=5 // pred_region
        %s1092 = ssub.s32 %s20, 2
        // Predicated region
        $region57: #{tpu_custom_call.1} parent=55 // pred_check
          %p1093 = pneg %p126
        $region58: #{tpu_custom_call.1} parent=55 // pred_check_branch
          %1095 = sbr.rel (%p1093) target = $region60
        $region59: #{tpu_custom_call.1} parent=55 // pred_region
          %s1096 = sand.u32 %s111, 1
          %s1097 = scalar_lea.sflag [#allocation5], %s1096
          %s1098 = sand.u32 %s111, 1
          %s1099 = smul.addr %s1098, 256
          %s1100 = scalar_lea.vmem [#allocation8], %s1099
          %1101 = dma.done %s1097, 4096
        $region60: #{tpu_custom_call.1} parent=55 // pred_fallthru
          _
        // Predicated region
        $region61: #{tpu_custom_call.1} parent=55 // pred_check
          %p1102 = pneg %p154
        $region62: #{tpu_custom_call.1} parent=55 // pred_check_branch
          %1104 = sbr.rel (%p1102) target = $region64
        $region63: #{tpu_custom_call.1} parent=55 // pred_region
          %s1105 = sand.u32 %s139, 1
          %s1106 = scalar_lea.sflag [#allocation10], %s1105
          %s1107 = sand.u32 %s139, 1
          %s1108 = smul.addr %s1107, 2
          %s1109 = scalar_lea.vmem [#allocation9], %s1108
          %1110 = dma.done %s1106, 32
        $region64: #{tpu_custom_call.1} parent=55 // pred_fallthru
          _
      $region56: #{tpu_custom_call.1} parent=5 // pred_fallthru
        _
    $region6: #{tpu_custom_call.1} parent=1 // loop_footer
      %s24 = sadd.s32 1, %s20
    $region7: #{tpu_custom_call.1} parent=1 // loop_footer_branch
      %19 = sbr.rel target = $region3
    $region8: #{tpu_custom_call.1} parent=1 // loop_exit
      _
    %1111 = vsyncpa [#allocation4], 1
    %s1112 = scalar_lea.sflag [#allocation4], 1
    %1113 = vsyncpa %s1112, 1
    %1114 = vsyncpa [#allocation7], 1
    %1115 = vsyncpa [#allocation5], 1
    %s1116 = scalar_lea.sflag [#allocation5], 1
    %1117 = vsyncpa %s1116, 1
    %1118 = vsyncpa [#allocation10], 1
    %s1119 = scalar_lea.sflag [#allocation10], 1
    %1120 = vsyncpa %s1119, 1

</llo_original>
